<compile_context>
chip_gen: v5e
topology: v5e:2x2
jax: 0.10.0
libtpu: 0.0.40
codegen_flags: <defaults>
</compile_context>

<pallas_src>
import functools
import math

import numpy as np

import jax
import jax.numpy as jnp
from jax.experimental import pallas as pl
from jax.experimental.pallas import tpu as pltpu


def _random_layer_kernel(f_ref, c_ref, rf_ref, rg_ref, o_ref, *, scale, vpu_rg):
    # Rf term: the only real contraction -> MXU matmul, f32 accumulation.
    f = f_ref[...]
    a = jnp.dot(f.astype(rf_ref.dtype), rf_ref[...],
                preferred_element_type=jnp.float32)

    if vpu_rg:
        # Tiny-K classifier term on the VPU: unrolled broadcast-multiply-add.
        # Scale is folded into the tiny [B, num_classes] activations (free).
        c = c_ref[...].astype(jnp.float32) * scale          # [B, num_classes]
        rg = rg_ref[...].astype(jnp.float32)                 # [num_classes, tile_n]
        b = c[:, 0:1] * rg[0:1, :]
        for k in range(1, c.shape[1]):                        # static, tiny unroll
            b = b + c[:, k:k + 1] * rg[k:k + 1, :]
        o_ref[...] = (a * b).astype(o_ref.dtype)
    else:
        b = jnp.dot(c_ref[...].astype(rg_ref.dtype), rg_ref[...],
                    preferred_element_type=jnp.float32)
        o_ref[...] = (scale * a * b).astype(o_ref.dtype)


def random_layer(feature_out, classifier_out, Rf, Rg, *,
                 tile_n=None, vpu_rg_threshold=8):
    """Pallas implementation of RandomLayer.forward.

    feature_out:    [B, feature_dim]   (f32)
    classifier_out: [B, num_classes]   (f32)
    Rf:             [feature_dim, output_dim]  (f32 or bf16)
    Rg:             [num_classes, output_dim]  (f32 or bf16)
    returns:        [B, output_dim]  (float32)
    """
    B, feature_dim = feature_out.shape
    Bc, num_classes = classifier_out.shape
    assert Bc == B
    fd, output_dim = Rf.shape
    assert fd == feature_dim
    assert Rg.shape == (num_classes, output_dim)

    if tile_n is None:
        # Biggest lane-dense tile that still leaves >= 2 grid steps (v7x megacore).
        half = output_dim // 2
        if output_dim >= 512 and half % 128 == 0:
            tile_n = half
        else:
            tile_n = output_dim
    assert output_dim % tile_n == 0, "output_dim must be divisible by tile_n"
    assert tile_n == output_dim or tile_n % 128 == 0, "tile_n must be lane-aligned"

    scale = 1.0 / math.sqrt(output_dim)
    vpu_rg = num_classes <= vpu_rg_threshold
    kernel = functools.partial(_random_layer_kernel, scale=scale, vpu_rg=vpu_rg)

    grid = (output_dim // tile_n,)

    # Explicit VMEM budget: double-buffered streamed tiles + resident activations,
    # with headroom.  Matters on v5e (16 MiB scoped default) when feature_dim and
    # tile_n are large; harmless for small shapes.
    rf_bytes = jnp.dtype(Rf.dtype).itemsize
    rg_bytes = jnp.dtype(Rg.dtype).itemsize
    f_bytes = jnp.dtype(feature_out.dtype).itemsize
    c_bytes = jnp.dtype(classifier_out.dtype).itemsize
    vmem_needed = (
        2 * feature_dim * tile_n * rf_bytes      # Rf tile, double-buffered
        + 2 * num_classes * tile_n * rg_bytes    # Rg tile, double-buffered
        + 2 * B * tile_n * 4                     # f32 output tile, double-buffered
        + B * feature_dim * f_bytes              # resident activations
        + B * num_classes * c_bytes
    )
    vmem_limit = int(min(64 << 20, max(2 * vmem_needed + (1 << 20), 16 << 20)))

    return pl.pallas_call(
        kernel,
        out_shape=jax.ShapeDtypeStruct((B, output_dim), jnp.float32),
        grid_spec=pltpu.PrefetchScalarGridSpec(
            num_scalar_prefetch=0,
            grid=grid,
            in_specs=[
                # feature_out / classifier_out: full blocks, resident across grid.
                pl.BlockSpec((B, feature_dim), lambda j: (0, 0)),
                pl.BlockSpec((B, num_classes), lambda j: (0, 0)),
                # Rf / Rg: streamed, tiled along output_dim.
                pl.BlockSpec((feature_dim, tile_n), lambda j: (0, j)),
                pl.BlockSpec((num_classes, tile_n), lambda j: (0, j)),
            ],
            out_specs=pl.BlockSpec((B, tile_n), lambda j: (0, j)),
        ),
        compiler_params=pltpu.CompilerParams(
            dimension_semantics=("parallel",),
            vmem_limit_bytes=vmem_limit,
        ),
    )(feature_out, classifier_out, Rf, Rg)


if __name__ == "__main__":
    # Small shapes consistent with the module's forward.
    B = 8
    feature_dim = 32
    num_classes = 4
    output_dim = 1024

    key = jax.random.PRNGKey(0)
    k_f, k_c, k_rf, k_rg = jax.random.split(key, 4)

    feature_out = jax.random.normal(k_f, (B, feature_dim), dtype=jnp.float32)
    classifier_out = jax.random.normal(k_c, (B, num_classes), dtype=jnp.float32)
    # Registered buffers (torch.randn) in f32 ...
    Rf_f32 = jax.random.normal(k_rf, (feature_dim, output_dim), dtype=jnp.float32)
    Rg_f32 = jax.random.normal(k_rg, (num_classes, output_dim), dtype=jnp.float32)
    # ... stored/streamed as bf16 (cast once at "parameter-init" time): halves the
    # dominant Rf HBM stream; MXU accumulation stays f32.
    Rf = Rf_f32.astype(jnp.bfloat16)
    Rg = Rg_f32.astype(jnp.bfloat16)

    out = jax.block_until_ready(random_layer(feature_out, classifier_out, Rf, Rg))
    assert out.shape == (B, output_dim)

    scale = 1.0 / math.sqrt(output_dim)
    out_np = np.asarray(out, dtype=np.float32)

    # Strict check vs a reference using the same bf16-rounded weights (numpy f32 math).
    f_b = np.asarray(feature_out.astype(jnp.bfloat16).astype(jnp.float32))
    c_np = np.asarray(classifier_out, dtype=np.float32)
    rf_b = np.asarray(Rf.astype(jnp.float32))
    rg_b = np.asarray(Rg.astype(jnp.float32))
    ref_bf16w = scale * (f_b @ rf_b) * (c_np @ rg_b)
    assert np.allclose(out_np, ref_bf16w, atol=1e-3, rtol=1e-3), \
        "mismatch vs bf16-weight reference"

    # Loose check vs the full-f32 PyTorch-module semantics (bf16 weight rounding only).
    ref_f32 = scale * (np.asarray(feature_out) @ np.asarray(Rf_f32)) \
        * (c_np @ np.asarray(Rg_f32))
    assert np.allclose(out_np, ref_f32, atol=5e-2, rtol=5e-2), \
        "mismatch vs f32 module reference"

    print("KERNEL_OK")
</pallas_src>

<mosaic_0001>
module attributes {stable_mosaic.version = 11 : i64} {
  func.func @_random_layer_kernel(%arg0: i32, %arg1: memref<8x32xf32, #tpu.memory_space<vmem>>, %arg2: memref<8x4xf32, #tpu.memory_space<vmem>>, %arg3: memref<32x512xbf16, #tpu.memory_space<vmem>>, %arg4: memref<4x512xbf16, #tpu.memory_space<vmem>>, %arg5: memref<8x512xf32, #tpu.memory_space<vmem>>) attributes {dimension_semantics = [#tpu.dimension_semantics<parallel>], iteration_bounds = array<i64: 2>, scalar_prefetch = 0 : i64, scratch_operands = 0 : i64, tpu.core_type = #tpu.core_type<tc>, window_params = [{pipeline_mode = #tpu.pipeline_mode<synchronous>, transform_indices = @transform_0, window_bounds = array<i64: 8, 32>}, {pipeline_mode = #tpu.pipeline_mode<synchronous>, transform_indices = @transform_1, window_bounds = array<i64: 8, 4>}, {transform_indices = @transform_2, window_bounds = array<i64: 32, 512>}, {transform_indices = @transform_3, window_bounds = array<i64: 4, 512>}, {transform_indices = @transform_4, window_bounds = array<i64: 8, 512>}]} {
    %c0 = arith.constant 0 : index
    %c0_0 = arith.constant 0 : index
    %0 = vector.load %arg1[%c0, %c0_0] : memref<8x32xf32, #tpu.memory_space<vmem>>, vector<8x32xf32>
    %1 = arith.truncf %0 : vector<8x32xf32> to vector<8x32xbf16>
    %c0_1 = arith.constant 0 : index
    %c0_2 = arith.constant 0 : index
    %2 = vector.load %arg3[%c0_1, %c0_2] : memref<32x512xbf16, #tpu.memory_space<vmem>>, vector<32x512xbf16>
    %cst = arith.constant dense<0.000000e+00> : vector<8x512xf32>
    %3 = tpu.matmul %1, %2, %cst {dimension_numbers = #tpu.dot_dimension_numbers<[1], [0], [0], [1], [0, 0, 1, 1], [], []>} : vector<8x32xbf16>, vector<32x512xbf16>, vector<8x512xf32> -> vector<8x512xf32>
    %c0_3 = arith.constant 0 : index
    %c0_4 = arith.constant 0 : index
    %4 = vector.load %arg2[%c0_3, %c0_4] : memref<8x4xf32, #tpu.memory_space<vmem>>, vector<8x4xf32>
    %cst_5 = arith.constant 3.125000e-02 : f32
    %5 = vector.broadcast %cst_5 : f32 to vector<8x4xf32>
    %6 = arith.mulf %4, %5 : vector<8x4xf32>
    %c0_6 = arith.constant 0 : index
    %c0_7 = arith.constant 0 : index
    %7 = vector.load %arg4[%c0_6, %c0_7] : memref<4x512xbf16, #tpu.memory_space<vmem>>, vector<4x512xbf16>
    %8 = arith.extf %7 : vector<4x512xbf16> to vector<4x512xf32>
    %9 = vector.extract_strided_slice %6 {offsets = [0, 0], sizes = [8, 1], strides = [1, 1]} : vector<8x4xf32> to vector<8x1xf32>
    %10 = vector.extract_strided_slice %8 {offsets = [0, 0], sizes = [1, 512], strides = [1, 1]} : vector<4x512xf32> to vector<1x512xf32>
    %11 = vector.broadcast %9 : vector<8x1xf32> to vector<8x512xf32>
    %12 = vector.broadcast %10 : vector<1x512xf32> to vector<8x512xf32>
    %13 = arith.mulf %11, %12 : vector<8x512xf32>
    %14 = vector.extract_strided_slice %6 {offsets = [0, 1], sizes = [8, 1], strides = [1, 1]} : vector<8x4xf32> to vector<8x1xf32>
    %15 = vector.extract_strided_slice %8 {offsets = [1, 0], sizes = [1, 512], strides = [1, 1]} : vector<4x512xf32> to vector<1x512xf32>
    %16 = vector.broadcast %14 : vector<8x1xf32> to vector<8x512xf32>
    %17 = vector.broadcast %15 : vector<1x512xf32> to vector<8x512xf32>
    %18 = arith.mulf %16, %17 : vector<8x512xf32>
    %19 = arith.addf %13, %18 : vector<8x512xf32>
    %20 = vector.extract_strided_slice %6 {offsets = [0, 2], sizes = [8, 1], strides = [1, 1]} : vector<8x4xf32> to vector<8x1xf32>
    %21 = vector.extract_strided_slice %8 {offsets = [2, 0], sizes = [1, 512], strides = [1, 1]} : vector<4x512xf32> to vector<1x512xf32>
    %22 = vector.broadcast %20 : vector<8x1xf32> to vector<8x512xf32>
    %23 = vector.broadcast %21 : vector<1x512xf32> to vector<8x512xf32>
    %24 = arith.mulf %22, %23 : vector<8x512xf32>
    %25 = arith.addf %19, %24 : vector<8x512xf32>
    %26 = vector.extract_strided_slice %6 {offsets = [0, 3], sizes = [8, 1], strides = [1, 1]} : vector<8x4xf32> to vector<8x1xf32>
    %27 = vector.extract_strided_slice %8 {offsets = [3, 0], sizes = [1, 512], strides = [1, 1]} : vector<4x512xf32> to vector<1x512xf32>
    %28 = vector.broadcast %26 : vector<8x1xf32> to vector<8x512xf32>
    %29 = vector.broadcast %27 : vector<1x512xf32> to vector<8x512xf32>
    %30 = arith.mulf %28, %29 : vector<8x512xf32>
    %31 = arith.addf %25, %30 : vector<8x512xf32>
    %32 = arith.mulf %3, %31 : vector<8x512xf32>
    %c0_8 = arith.constant 0 : index
    %c0_9 = arith.constant 0 : index
    %33 = vector.load %arg5[%c0_8, %c0_9] : memref<8x512xf32, #tpu.memory_space<vmem>>, vector<8x512xf32>
    tpu.vector_store %arg5[%c0_8, %c0_9], %32 {strides = array<i32>} : memref<8x512xf32, #tpu.memory_space<vmem>>, vector<8x512xf32>,
    return
  }
  func.func @transform_0(%arg0: i32) -> (i32, i32) {
    %c0_i32 = arith.constant 0 : i32
    %c0_i32_0 = arith.constant 0 : i32
    %c0_i32_1 = arith.constant 0 : i32
    return %c0_i32, %c0_i32_0 : i32, i32
  }
  func.func @transform_1(%arg0: i32) -> (i32, i32) {
    %c0_i32 = arith.constant 0 : i32
    %c0_i32_0 = arith.constant 0 : i32
    %c0_i32_1 = arith.constant 0 : i32
    return %c0_i32, %c0_i32_0 : i32, i32
  }
  func.func @transform_2(%arg0: i32) -> (i32, i32) {
    %c0_i32 = arith.constant 0 : i32
    %c0_i32_0 = arith.constant 0 : i32
    return %c0_i32, %arg0 : i32, i32
  }
  func.func @transform_3(%arg0: i32) -> (i32, i32) {
    %c0_i32 = arith.constant 0 : i32
    %c0_i32_0 = arith.constant 0 : i32
    return %c0_i32, %arg0 : i32, i32
  }
  func.func @transform_4(%arg0: i32) -> (i32, i32) {
    %c0_i32 = arith.constant 0 : i32
    %c0_i32_0 = arith.constant 0 : i32
    return %c0_i32, %arg0 : i32, i32
  }
}

</mosaic_0001>

<llo_original>
// kernel: tpu_custom_call.1
$region0: #{tpu_custom_call.1}
  #allocation0 [shape = 'u32[]', space=smem, size = 0x4, offset = 0x4, fixed_abs, tag = 'smem constant byte address 0x4 - core index']
  #allocation1 [shape = 'u32[72,128]{1,0:T(1,128)}', space=vmem, size = 0x9000, scoped, tag = 'internal scratch']
  %s0 = inlined_call_operand.vmem [shape: f32[8,32], index: 0, kind: input, shape index: {}]
  %s1 = inlined_call_operand.vmem [shape: f32[8,4], index: 1, kind: input, shape index: {}]
  %s2 = inlined_call_operand.hbm [shape: bf16[32,1024], index: 2, kind: input, shape index: {}]
  %s3 = inlined_call_operand.hbm [shape: bf16[4,1024], index: 3, kind: input, shape index: {}]
  %s4 = inlined_call_operand.hbm [shape: f32[8,1024], index: 4, kind: output, shape index: {}]
  %s5 = sld [smem:[#allocation0]]
  $region57: #{tpu_custom_call.1} parent=0
    _
  %s7 = ssub.s32 1, %s5
  %s8 = scalar_select 0, %s7, %s5
  $region1: #{tpu_custom_call.1} parent=0
    #allocation2 [shape = 'u8[65536]{0}', space=vmem, size = 0x10000, scoped, tag = 'input window, operand 2']
    #allocation3 [shape = 's32[2]{0}', space=sflag, size = 0x8, scoped, tag = 'scoped memory for tpu_custom_call.1']
    #allocation4 [shape = 's32[2]{0}', space=sflag, size = 0x8, scoped, tag = 'scoped memory for tpu_custom_call.1']
    #allocation5 [shape = 'u8[8192]{0}', space=vmem, size = 0x2000, scoped, tag = 'input window, operand 3']
    #allocation6 [shape = 's32[2]{0}', space=sflag, size = 0x8, scoped, tag = 'scoped memory for tpu_custom_call.1']
    #allocation7 [shape = 'u8[32768]{0}', space=vmem, size = 0x8000, scoped, tag = 'output window, operand 0']
    %9 = vsyncpa [#allocation3], 0
    %s10 = scalar_lea.sflag [#allocation3], 1
    %11 = vsyncpa %s10, 0
    %12 = vsyncpa [#allocation6], 0
    %s13 = scalar_lea.sflag [#allocation6], 1
    %14 = vsyncpa %s13, 0
    %15 = vsyncpa [#allocation4], 0
    %s16 = scalar_lea.sflag [#allocation4], 1
    %17 = vsyncpa %s16, 0
    loop: start=0, step=1, limit=4
    $region2: #{tpu_custom_call.1} parent=1 // loop_pre_header
      _
    $region3: #{tpu_custom_call.1} parent=1 // loop_header
      %s19 = sphi 0, %s23
      %p20 = scmp.ge.s32.totalorder %s19, 4
      %s27 = sphi 0, %s27
      %s29 = sphi 0, %s27
      %s30 = sphi 0, %s29
      %s44 = sphi 0, %s30
      %s48 = sphi 0, %s48
      %s50 = sphi 0, %s48
      %s51 = sphi 0, %s50
      %s65 = sphi 0, %s51
      %s71 = sphi 0, %s73
      %s74 = sphi 0, %s71
      %s75 = sphi 0, %s74
      %s91 = sphi 0, %s75
      %s97 = sphi 0, %s99
      %s100 = sphi 0, %s97
      %s101 = sphi 0, %s100
      %s117 = sphi 0, %s101
      %s123 = sphi 0, %s125
      %s126 = sphi 0, %s123
      %s127 = sphi 0, %s126
      %s143 = sphi 0, %s127
    $region4: #{tpu_custom_call.1} parent=1 // loop_header_branch
      %22 = sbr.rel (%p20) target = $region8
    $region5: #{tpu_custom_call.1} parent=1 // loop_body
      %s24 = ssub.s32 %s19, 1
      %s25 = ssub.s32 %s19, 2
      %s26 = sadd.s32 %s19, 1
      %s28 = sadd.s32 %s27, 1
      %p31 = scmp.eq.s32.totalorder %s19, 1
      %p32 = scmp.ne.s32.totalorder %s27, %s29
      %p33 = scmp.eq.s32.totalorder %s19, 0
      %p34 = por %p32, %p33
      %p35 = scmp.ne.s32.totalorder %s27, %s29
      %p36 = scmp.eq.s32.totalorder %s24, 1
      %p37 = por %p35, %p36
      %p38 = scmp.ne.s32.totalorder %s29, %s30
      %p39 = scmp.eq.s32.totalorder %s24, 0
      %p40 = por %p38, %p39
      %p41 = scmp.ne.s32.totalorder %s29, %s30
      %p42 = scmp.eq.s32.totalorder %s25, 1
      %p43 = por %p41, %p42
      %p45 = scmp.ne.s32.totalorder %s30, %s44
      %p46 = scmp.eq.s32.totalorder %s25, 0
      %p47 = por %p45, %p46
      %s49 = sadd.s32 %s48, 1
      %p52 = scmp.eq.s32.totalorder %s19, 1
      %p53 = scmp.ne.s32.totalorder %s48, %s50
      %p54 = scmp.eq.s32.totalorder %s19, 0
      %p55 = por %p53, %p54
      %p56 = scmp.ne.s32.totalorder %s48, %s50
      %p57 = scmp.eq.s32.totalorder %s24, 1
      %p58 = por %p56, %p57
      %p59 = scmp.ne.s32.totalorder %s50, %s51
      %p60 = scmp.eq.s32.totalorder %s24, 0
      %p61 = por %p59, %p60
      %p62 = scmp.ne.s32.totalorder %s50, %s51
      %p63 = scmp.eq.s32.totalorder %s25, 1
      %p64 = por %p62, %p63
      %p66 = scmp.ne.s32.totalorder %s51, %s65
      %p67 = scmp.eq.s32.totalorder %s25, 0
      %p68 = por %p66, %p67
      %s69 = ssub.s32 %s19, %s26
      %p70 = scmp.eq.s32.totalorder %s69, 0
      %s72 = sadd.s32 %s71, 1
      %s73 = scalar_select %p70, %s71, %s72
      %p76 = pneg %p70
      %p77 = scmp.eq.s32.totalorder %s19, 1
      %p78 = por %p76, %p77
      %p79 = scmp.ne.s32.totalorder %s71, %s74
      %p80 = scmp.eq.s32.totalorder %s19, 0
      %p81 = por %p79, %p80
      %p82 = scmp.ne.s32.totalorder %s71, %s74
      %p83 = scmp.eq.s32.totalorder %s24, 1
      %p84 = por %p82, %p83
      %p85 = scmp.ne.s32.totalorder %s74, %s75
      %p86 = scmp.eq.s32.totalorder %s24, 0
      %p87 = por %p85, %p86
      %p88 = scmp.ne.s32.totalorder %s74, %s75
      %p89 = scmp.eq.s32.totalorder %s25, 1
      %p90 = por %p88, %p89
      %p92 = scmp.ne.s32.totalorder %s75, %s91
      %p93 = scmp.eq.s32.totalorder %s25, 0
      %p94 = por %p92, %p93
      %s95 = ssub.s32 %s19, %s26
      %p96 = scmp.eq.s32.totalorder %s95, 0
      %s98 = sadd.s32 %s97, 1
      %s99 = scalar_select %p96, %s97, %s98
      %p102 = pneg %p96
      %p103 = scmp.eq.s32.totalorder %s19, 1
      %p104 = por %p102, %p103
      %p105 = scmp.ne.s32.totalorder %s97, %s100
      %p106 = scmp.eq.s32.totalorder %s19, 0
      %p107 = por %p105, %p106
      %p108 = scmp.ne.s32.totalorder %s97, %s100
      %p109 = scmp.eq.s32.totalorder %s24, 1
      %p110 = por %p108, %p109
      %p111 = scmp.ne.s32.totalorder %s100, %s101
      %p112 = scmp.eq.s32.totalorder %s24, 0
      %p113 = por %p111, %p112
      %p114 = scmp.ne.s32.totalorder %s100, %s101
      %p115 = scmp.eq.s32.totalorder %s25, 1
      %p116 = por %p114, %p115
      %p118 = scmp.ne.s32.totalorder %s101, %s117
      %p119 = scmp.eq.s32.totalorder %s25, 0
      %p120 = por %p118, %p119
      %s121 = ssub.s32 %s19, %s26
      %p122 = scmp.eq.s32.totalorder %s121, 0
      %s124 = sadd.s32 %s123, 1
      %s125 = scalar_select %p122, %s123, %s124
      %p128 = pneg %p122
      %p129 = scmp.eq.s32.totalorder %s19, 1
      %p130 = por %p128, %p129
      %p131 = scmp.ne.s32.totalorder %s123, %s126
      %p132 = scmp.eq.s32.totalorder %s19, 0
      %p133 = por %p131, %p132
      %p134 = scmp.ne.s32.totalorder %s123, %s126
      %p135 = scmp.eq.s32.totalorder %s24, 1
      %p136 = por %p134, %p135
      %p137 = scmp.ne.s32.totalorder %s126, %s127
      %p138 = scmp.eq.s32.totalorder %s24, 0
      %p139 = por %p137, %p138
      %p140 = scmp.ne.s32.totalorder %s126, %s127
      %p141 = scmp.eq.s32.totalorder %s25, 1
      %p142 = por %p140, %p141
      %p144 = scmp.ne.s32.totalorder %s127, %s143
      %p145 = scmp.eq.s32.totalorder %s25, 0
      %p146 = por %p144, %p145
      %p147 = scmp.le.s32.totalorder 1, %s19
      %p148 = scmp.lt.s32.totalorder %s19, 3
      %p149 = pnand %p147, %p148
      %p150 = pneg %p149
      // Predicated region
      $region9: #{tpu_custom_call.1} parent=5 // pred_check
        _
      $region10: #{tpu_custom_call.1} parent=5 // pred_check_branch
        %152 = sbr.rel (%p149) target = $region12
      $region11: #{tpu_custom_call.1} parent=5 // pred_region
        %s153 = ssub.s32 %s19, 1
        // Predicated region
        $region13: #{tpu_custom_call.1} parent=11 // pred_check
          %p154 = pneg %p40
        $region14: #{tpu_custom_call.1} parent=11 // pred_check_branch
          %156 = sbr.rel (%p154) target = $region16
        $region15: #{tpu_custom_call.1} parent=11 // pred_region
          _
        $region16: #{tpu_custom_call.1} parent=11 // pred_fallthru
          _
        // Predicated region
        $region17: #{tpu_custom_call.1} parent=11 // pred_check
          %p157 = pneg %p61
        $region18: #{tpu_custom_call.1} parent=11 // pred_check_branch
          %159 = sbr.rel (%p157) target = $region20
        $region19: #{tpu_custom_call.1} parent=11 // pred_region
          _
        $region20: #{tpu_custom_call.1} parent=11 // pred_fallthru
          _
      $region12: #{tpu_custom_call.1} parent=5 // pred_fallthru
        _
      %p160 = scmp.lt.s32.totalorder %s19, 2
      // Predicated region
      $region21: #{tpu_custom_call.1} parent=5 // pred_check
        %p161 = pneg %p160
      $region22: #{tpu_custom_call.1} parent=5 // pred_check_branch
        %163 = sbr.rel (%p161) target = $region24
      $region23: #{tpu_custom_call.1} parent=5 // pred_region
        // Predicated region
        $region25: #{tpu_custom_call.1} parent=23 // pred_check
          %p164 = pneg %p81
        $region26: #{tpu_custom_call.1} parent=23 // pred_check_branch
          %166 = sbr.rel (%p164) target = $region28
        $region27: #{tpu_custom_call.1} parent=23 // pred_region
          %s167 = sand.u32 %s71, 1
          %s168 = scalar_lea.sflag [#allocation3], %s167
          %s169 = sand.u32 %s71, 1
          %s170 = smul.addr %s169, 64
          %s171 = scalar_lea.vmem [#allocation2], %s170
          %s172 = smul.u32 4, %s19
          %174 = vsyncadd %s168, 0
          %s175 = smul.addr %s172, 4
          %s176 = scalar_lea.hbm %s2, %s175
          %s177 = sshll.u32 %s176, 4
          %s178 = int_to_ptr.hbm [resolvable:$true] %s177
          %s179 = sshll.u32 %s171, 4
          %s180 = int_to_ptr.vmem [resolvable:$true] %s179
          %185 = dma.hbm_to_vmem [thread:$0]  %s178, 1024, %s180, %s168, 512, 256, 16
        $region28: #{tpu_custom_call.1} parent=23 // pred_fallthru
          _
        // Predicated region
        $region29: #{tpu_custom_call.1} parent=23 // pred_check
          %p186 = pneg %p107
        $region30: #{tpu_custom_call.1} parent=23 // pred_check_branch
          %188 = sbr.rel (%p186) target = $region32
        $region31: #{tpu_custom_call.1} parent=23 // pred_region
          %s189 = sand.u32 %s97, 1
          %s190 = scalar_lea.sflag [#allocation6], %s189
          %s191 = sand.u32 %s97, 1
          %s192 = smul.addr %s191, 8
          %s193 = scalar_lea.vmem [#allocation5], %s192
          %s194 = smul.u32 4, %s19
          %196 = vsyncadd %s190, 0
          %s197 = smul.addr %s194, 2
          %s198 = scalar_lea.hbm %s3, %s197
          %s200 = sshll.u32 %s198, 4
          %s201 = int_to_ptr.hbm [resolvable:$true] %s200
          %s202 = sshll.u32 %s193, 4
          %s203 = int_to_ptr.vmem [resolvable:$true] %s202
          %205 = dma.hbm_to_vmem [thread:$0]  %s201, 128, %s203, %s190
        $region32: #{tpu_custom_call.1} parent=23 // pred_fallthru
          _
      $region24: #{tpu_custom_call.1} parent=5 // pred_fallthru
        _
      %p206 = scmp.le.s32.totalorder 1, %s19
      %p207 = scmp.lt.s32.totalorder %s19, 3
      %p208 = pnand %p206, %p207
      %p209 = pneg %p208
      // Predicated region
      $region33: #{tpu_custom_call.1} parent=5 // pred_check
        _
      $region34: #{tpu_custom_call.1} parent=5 // pred_check_branch
        %211 = sbr.rel (%p208) target = $region36
      $region35: #{tpu_custom_call.1} parent=5 // pred_region
        %s212 = ssub.s32 %s19, 1
        %s213 = sand.u32 %s74, 1
        %s214 = scalar_lea.sflag [#allocation3], %s213
        %s215 = sand.u32 %s74, 1
        %s216 = smul.addr %s215, 64
        %s217 = scalar_lea.vmem [#allocation2], %s216
        // Predicated region
        $region37: #{tpu_custom_call.1} parent=35 // pred_check
          %p218 = pneg %p87
        $region38: #{tpu_custom_call.1} parent=35 // pred_check_branch
          %220 = sbr.rel (%p218) target = $region40
        $region39: #{tpu_custom_call.1} parent=35 // pred_region
          %222 = dma.done %s214, 1024
        $region40: #{tpu_custom_call.1} parent=35 // pred_fallthru
          _
        %s223 = sand.u32 %s100, 1
        %s224 = scalar_lea.sflag [#allocation6], %s223
        %s225 = sand.u32 %s100, 1
        %s226 = smul.addr %s225, 8
        %s227 = scalar_lea.vmem [#allocation5], %s226
        // Predicated region
        $region41: #{tpu_custom_call.1} parent=35 // pred_check
          %p228 = pneg %p113
        $region42: #{tpu_custom_call.1} parent=35 // pred_check_branch
          %230 = sbr.rel (%p228) target = $region44
        $region43: #{tpu_custom_call.1} parent=35 // pred_region
          %232 = dma.done %s224, 128
        $region44: #{tpu_custom_call.1} parent=35 // pred_fallthru
          _
        %p233 = pneg %p40
        %p234 = pneg %p37
        %p235 = pneg %p61
        %p236 = pneg %p58
        %s237 = sand.u32 %s74, 1
        %s238 = scalar_lea.sflag [#allocation3], %s237
        %s239 = sand.u32 %s74, 1
        %s240 = smul.addr %s239, 64
        %s241 = scalar_lea.vmem [#allocation2], %s240
        %p242 = pneg %p87
        %p243 = pneg %p84
        %s244 = sand.u32 %s100, 1
        %s245 = scalar_lea.sflag [#allocation6], %s244
        %s246 = sand.u32 %s100, 1
        %s247 = smul.addr %s246, 8
        %s248 = scalar_lea.vmem [#allocation5], %s247
        %p249 = pneg %p113
        %p250 = pneg %p110
        %p251 = pneg %p139
        %p252 = pneg %p136
        %s253 = sand.u32 %s126, 1
        %s254 = scalar_lea.sflag [#allocation4], %s253
        %s255 = sand.u32 %s126, 1
        %s256 = smul.addr %s255, 32
        %s257 = scalar_lea.vmem [#allocation7], %s256
        %s258 = smul.u32 4, %s24
        %s259 = smul.u32 4, %s24
        %s260 = smul.u32 4, %s24
        %v262 = vld [vmem:[%s0] sm:$0xff]
        %v263 = vpack.c.bf16 %v262, %v262
        %v264 = vld [vmem:[%s217] sm:$0xff]
        %v265 = vld [vmem:[%s217 + $0x8] sm:$0xff]
        %v266 = vld [vmem:[%s217 + $0x10] sm:$0xff]
        %v267 = vld [vmem:[%s217 + $0x18] sm:$0xff]
        %v268 = vld [vmem:[%s217 + $0x20] sm:$0xff]
        %v269 = vld [vmem:[%s217 + $0x28] sm:$0xff]
        %v270 = vld [vmem:[%s217 + $0x30] sm:$0xff]
        %v271 = vld [vmem:[%s217 + $0x38] sm:$0xff]
        %v280 = vunpack.c.l.b16 %v264
        %v281 = vunpack.c.h.b16 %v264
        %v282 = vunpack.c.l.b16 %v265
        %v283 = vunpack.c.h.b16 %v265
        %v284 = vunpack.c.l.b16 %v266
        %v285 = vunpack.c.h.b16 %v266
        %v286 = vunpack.c.l.b16 %v267
        %v287 = vunpack.c.h.b16 %v267
        %v288 = vunpack.c.l.b16 %v268
        %v289 = vunpack.c.h.b16 %v268
        %v290 = vunpack.c.l.b16 %v269
        %v291 = vunpack.c.h.b16 %v269
        %v292 = vunpack.c.l.b16 %v270
        %v293 = vunpack.c.h.b16 %v270
        %v294 = vunpack.c.l.b16 %v271
        %v295 = vunpack.c.h.b16 %v271
        %v296 = vpack.c.b16 %v284, %v280
        %v297 = vpack.c.b16 %v285, %v281
        %v298 = vpack.c.b16 %v286, %v282
        %v299 = vpack.c.b16 %v287, %v283
        %v300 = vpack.c.b16 %v292, %v288
        %v301 = vpack.c.b16 %v293, %v289
        %v302 = vpack.c.b16 %v294, %v290
        %v303 = vpack.c.b16 %v295, %v291
        %vm312 = vcmask 261120
        %v314 = vsel %vm312, %v263, 0
        %316 = vmatpush.bf16.msra.mxu0 0
        %317 = vmatpush.bf16.msra.mxu0 0
        %318 = vmatpush.bf16.msra.mxu0 0
        %319 = vmatpush.bf16.msra.mxu0 0
        %320 = vmatpush.bf16.msra.mxu0 0
        %321 = vmatpush.bf16.msra.mxu0 0
        %322 = vmatpush.bf16.msra.mxu0 %v300
        %323 = vmatpush.bf16.msra.mxu0 %v296
        %324 = vmatmul.bf16.gmra.mxu0 %v314
        %v325 = vpop.f32.mrf.mxu0
        %v326 = vadd.f32 0.0, %v325
        %v327 = vpop.f32.mrf.mxu0
        %328 = vdwg.mxu0
        %329 = vmatpush.bf16.msra.mxu0 0
        %330 = vmatpush.bf16.msra.mxu0 0
        %331 = vmatpush.bf16.msra.mxu0 0
        %332 = vmatpush.bf16.msra.mxu0 0
        %333 = vmatpush.bf16.msra.mxu0 0
        %334 = vmatpush.bf16.msra.mxu0 0
        %335 = vmatpush.bf16.msra.mxu0 %v301
        %336 = vmatpush.bf16.msra.mxu0 %v297
        %337 = vmatmul.bf16.gmra.mxu0 %v314
        %v338 = vpop.f32.mrf.mxu0
        %v339 = vadd.f32 0.0, %v338
        %v340 = vpop.f32.mrf.mxu0
        %341 = vdwg.mxu0
        %342 = vmatpush.bf16.msra.mxu0 0
        %343 = vmatpush.bf16.msra.mxu0 0
        %344 = vmatpush.bf16.msra.mxu0 0
        %345 = vmatpush.bf16.msra.mxu0 0
        %346 = vmatpush.bf16.msra.mxu0 0
        %347 = vmatpush.bf16.msra.mxu0 0
        %348 = vmatpush.bf16.msra.mxu0 %v302
        %349 = vmatpush.bf16.msra.mxu0 %v298
        %350 = vmatmul.bf16.gmra.mxu0 %v314
        %v351 = vpop.f32.mrf.mxu0
        %v352 = vadd.f32 0.0, %v351
        %v353 = vpop.f32.mrf.mxu0
        %354 = vdwg.mxu0
        %355 = vmatpush.bf16.msra.mxu0 0
        %356 = vmatpush.bf16.msra.mxu0 0
        %357 = vmatpush.bf16.msra.mxu0 0
        %358 = vmatpush.bf16.msra.mxu0 0
        %359 = vmatpush.bf16.msra.mxu0 0
        %360 = vmatpush.bf16.msra.mxu0 0
        %361 = vmatpush.bf16.msra.mxu0 %v303
        %362 = vmatpush.bf16.msra.mxu0 %v299
        %363 = vmatmul.bf16.gmra.mxu0 %v314
        %v364 = vpop.f32.mrf.mxu0
        %v365 = vadd.f32 0.0, %v364
        %v366 = vpop.f32.mrf.mxu0
        %367 = vdwg.mxu0
        %v368 = vld [vmem:[%s1] sm:$0xff]
        %v369 = vmul.f32 %v368, 0.03125
        %v370 = vld [vmem:[%s227] sm:$0xff]
        %v371 = vunpack.c.l.bf16 %v370
        %v372 = vunpack.c.h.bf16 %v370
        %374 = vset.pattern.permute.xlu0 0
        %375 = vperm.xlu0 %374, %v369
        %v376 = vpop.permute.xlu0 %375
        %v380 = vperm.slane %v371, 0
        %v381 = vperm.slane %v371, 4
        %v382 = vperm.slane %v372, 0
        %v383 = vperm.slane %v372, 4
        %v388 = vperm.slane %v380, 0
        %v389 = vperm.slane %v381, 0
        %v390 = vperm.slane %v382, 0
        %v391 = vperm.slane %v383, 0
        %v392 = vmul.f32 %v376, %v388
        %v393 = vmul.f32 %v376, %v389
        %v394 = vmul.f32 %v376, %v390
        %v395 = vmul.f32 %v376, %v391
        %396 = vset.pattern.permute.xlu0 1
        %397 = vperm.xlu0 %396, %v369
        %v398 = vpop.permute.xlu0 %397
        %v400 = vperm.slane %v371, 1
        %v401 = vperm.slane %v371, 5
        %v402 = vperm.slane %v372, 1
        %v403 = vperm.slane %v372, 5
        %v408 = vperm.slane %v400, 1
        %v409 = vperm.slane %v401, 1
        %v410 = vperm.slane %v402, 1
        %v411 = vperm.slane %v403, 1
        %v412 = vmul.f32 %v398, %v408
        %v413 = vmul.f32 %v398, %v409
        %v414 = vmul.f32 %v398, %v410
        %v415 = vmul.f32 %v398, %v411
        %v416 = vadd.f32 %v392, %v412
        %v417 = vadd.f32 %v393, %v413
        %v418 = vadd.f32 %v394, %v414
        %v419 = vadd.f32 %v395, %v415
        %420 = vset.pattern.permute.xlu0 2
        %421 = vperm.xlu0 %420, %v369
        %v422 = vpop.permute.xlu0 %421
        %v424 = vperm.slane %v371, 2
        %v425 = vperm.slane %v371, 6
        %v426 = vperm.slane %v372, 2
        %v427 = vperm.slane %v372, 6
        %v432 = vperm.slane %v424, 2
        %v433 = vperm.slane %v425, 2
        %v434 = vperm.slane %v426, 2
        %v435 = vperm.slane %v427, 2
        %v436 = vmul.f32 %v422, %v432
        %v437 = vmul.f32 %v422, %v433
        %v438 = vmul.f32 %v422, %v434
        %v439 = vmul.f32 %v422, %v435
        %v440 = vadd.f32 %v416, %v436
        %v441 = vadd.f32 %v417, %v437
        %v442 = vadd.f32 %v418, %v438
        %v443 = vadd.f32 %v419, %v439
        %444 = vset.pattern.permute.xlu0 3
        %445 = vperm.xlu0 %444, %v369
        %v446 = vpop.permute.xlu0 %445
        %v448 = vperm.slane %v371, 3
        %v449 = vperm.slane %v371, 7
        %v450 = vperm.slane %v372, 3
        %v451 = vperm.slane %v372, 7
        %v456 = vperm.slane %v448, 3
        %v457 = vperm.slane %v449, 3
        %v458 = vperm.slane %v450, 3
        %v459 = vperm.slane %v451, 3
        %v460 = vmul.f32 %v446, %v456
        %v461 = vmul.f32 %v446, %v457
        %v462 = vmul.f32 %v446, %v458
        %v463 = vmul.f32 %v446, %v459
        %v464 = vadd.f32 %v440, %v460
        %v465 = vadd.f32 %v441, %v461
        %v466 = vadd.f32 %v442, %v462
        %v467 = vadd.f32 %v443, %v463
        %v468 = vmul.f32 %v326, %v464
        %v469 = vmul.f32 %v339, %v465
        %v470 = vmul.f32 %v352, %v466
        %v471 = vmul.f32 %v365, %v467
        %472 = vst [vmem:[%s257] sm:$0xff] %v468
        %473 = vst [vmem:[%s257 + $0x8] sm:$0xff] %v469
        %474 = vst [vmem:[%s257 + $0x10] sm:$0xff] %v470
        %475 = vst [vmem:[%s257 + $0x18] sm:$0xff] %v471
        %s476 = sand.u32 %s126, 1
        %s477 = scalar_lea.sflag [#allocation4], %s476
        %s478 = sand.u32 %s126, 1
        %s479 = smul.addr %s478, 32
        %s480 = scalar_lea.vmem [#allocation7], %s479
        // Predicated region
        $region45: #{tpu_custom_call.1} parent=35 // pred_check
          %p481 = pneg %p136
        $region46: #{tpu_custom_call.1} parent=35 // pred_check_branch
          %483 = sbr.rel (%p481) target = $region48
        $region47: #{tpu_custom_call.1} parent=35 // pred_region
          %s484 = smul.u32 4, %s24
          %486 = vsyncadd %s477, 0
          %s487 = smul.addr %s484, 8
          %s488 = scalar_lea.hbm %s4, %s487
          %s490 = sshll.u32 %s480, 4
          %s491 = int_to_ptr.vmem [resolvable:$true] %s490
          %s492 = sshll.u32 %s488, 4
          %s493 = int_to_ptr.hbm [resolvable:$true] %s492
          %495 = dma.vmem_to_hbm [thread:$0]  %s491, 512, %s493, %s477
        $region48: #{tpu_custom_call.1} parent=35 // pred_fallthru
          _
      $region36: #{tpu_custom_call.1} parent=5 // pred_fallthru
        _
      %p496 = scmp.le.s32.totalorder 2, %s19
      // Predicated region
      $region49: #{tpu_custom_call.1} parent=5 // pred_check
        %p497 = pneg %p496
      $region50: #{tpu_custom_call.1} parent=5 // pred_check_branch
        %499 = sbr.rel (%p497) target = $region52
      $region51: #{tpu_custom_call.1} parent=5 // pred_region
        %s500 = ssub.s32 %s19, 2
        // Predicated region
        $region53: #{tpu_custom_call.1} parent=51 // pred_check
          %p501 = pneg %p142
        $region54: #{tpu_custom_call.1} parent=51 // pred_check_branch
          %503 = sbr.rel (%p501) target = $region56
        $region55: #{tpu_custom_call.1} parent=51 // pred_region
          %s504 = sand.u32 %s127, 1
          %s505 = scalar_lea.sflag [#allocation4], %s504
          %s506 = sand.u32 %s127, 1
          %s507 = smul.addr %s506, 32
          %s508 = scalar_lea.vmem [#allocation7], %s507
          %510 = dma.done %s505, 512
        $region56: #{tpu_custom_call.1} parent=51 // pred_fallthru
          _
      $region52: #{tpu_custom_call.1} parent=5 // pred_fallthru
        _
    $region6: #{tpu_custom_call.1} parent=1 // loop_footer
      %s23 = sadd.s32 1, %s19
    $region7: #{tpu_custom_call.1} parent=1 // loop_footer_branch
      %18 = sbr.rel target = $region3
    $region8: #{tpu_custom_call.1} parent=1 // loop_exit
      _
    %511 = vsyncpa [#allocation3], 1
    %s512 = scalar_lea.sflag [#allocation3], 1
    %513 = vsyncpa %s512, 1
    %514 = vsyncpa [#allocation6], 1
    %s515 = scalar_lea.sflag [#allocation6], 1
    %516 = vsyncpa %s515, 1
    %517 = vsyncpa [#allocation4], 1
    %s518 = scalar_lea.sflag [#allocation4], 1
    %519 = vsyncpa %s518, 1

</llo_original>
